<compile_context>
chip_gen: v6e
topology: v6e:2x2x1
jax: 0.10.0
libtpu: 0.0.40
codegen_flags: <defaults>
</compile_context>

<pallas_src>
import jax
import jax.numpy as jnp
from jax import lax
from jax.experimental import pallas as pl
from jax.experimental.pallas import tpu as pltpu


def _mlp_kernel(xn_ref, eh_ref, w1_ref, b1_ref, w2_ref, b2_ref, w3_ref, b3_ref, o_ref):
    # Layer 1: [TB, Dp](bf16) @ [Dp, H](bf16) on the MXU, f32 accumulate.
    # Embedding contribution (pre-folded through W1 in the wrapper) + bias in f32.
    h1 = jnp.dot(xn_ref[...], w1_ref[...], preferred_element_type=jnp.float32)
    h1 = jnp.maximum(h1 + eh_ref[...].astype(jnp.float32) + b1_ref[...], 0.0)

    # Layer 2: [TB, H] @ [H, H], f32 accumulate, ReLU in f32.
    h2 = jnp.dot(h1, w2_ref[...].astype(jnp.float32),
                 preferred_element_type=jnp.float32)
    h2 = jnp.maximum(h2 + b2_ref[...], 0.0)

    # Layer 3: contract H of h2 against the (1, H) weight row so the result is
    # a lane-dense (1, TB) row (wide unmasked stores, no (TB, 1) masked column).
    out = lax.dot_general(
        w3_ref[...], h2,
        dimension_numbers=(((1,), (1,)), ((), ())),
        preferred_element_type=jnp.float32)
    o_ref[0] = out + b3_ref[0, 0]


def mlp_forward(x_num, x_cat, params, *, tb=None):
    """Forward pass of MLP (bn=False, dropout=0 -> inference identity)."""
    embs = params["embs"]                       # list of [n_cat_i, emb_dim] tables
    w1, b1 = params["w1"], params["b1"]         # (D_in, H), (1, H)
    w2, b2 = params["w2"], params["b2"]         # (H, H), (1, H)
    w3, b3 = params["w3"], params["b3"]         # (H, 1), (1, 1)

    x_num = x_num.astype(jnp.float32)
    B, d_num = x_num.shape
    H = w1.shape[1]
    emb_dim = embs[0].shape[1]

    # Fold each embedding table through its slice of W1 (T_i = emb_i @ W1_slice_i),
    # then gather + sum per row: eliminates the x_all concat materialization.
    emb_h1 = jnp.zeros((B, H), jnp.float32)
    for i, tbl in enumerate(embs):
        w1_slice = w1[d_num + i * emb_dim: d_num + (i + 1) * emb_dim, :]
        t_i = tbl.astype(jnp.float32) @ w1_slice        # [n_cat_i, H], tiny
        emb_h1 = emb_h1 + t_i[x_cat[:, i]]

    # Pad the numeric feature dim to a multiple of 8 sublanes (zero cols / rows).
    d_pad = ((d_num + 7) // 8) * 8
    w1_num = w1[:d_num, :]
    if d_pad != d_num:
        w1_num = jnp.concatenate(
            [w1_num, jnp.zeros((d_pad - d_num, H), w1.dtype)], axis=0)
        x_num = jnp.concatenate(
            [x_num, jnp.zeros((B, d_pad - d_num), x_num.dtype)], axis=1)

    # Batch tiling: large tiles amortize per-step overhead; pad last tile.
    if tb is None:
        tb = int(min(2048, max(256, pl.next_power_of_2(B))))
    num_tiles = pl.cdiv(B, tb)
    b_pad = num_tiles * tb
    if b_pad != B:
        x_num = jnp.concatenate(
            [x_num, jnp.zeros((b_pad - B, d_pad), x_num.dtype)], axis=0)
        emb_h1 = jnp.concatenate(
            [emb_h1, jnp.zeros((b_pad - B, H), emb_h1.dtype)], axis=0)

    # bf16 streams for the bandwidth-dominant inputs; biases / w3 / output stay f32.
    x_bf = x_num.astype(jnp.bfloat16)
    eh_bf = emb_h1.astype(jnp.bfloat16)
    w1_bf = w1_num.astype(jnp.bfloat16)
    w2_bf = w2.astype(jnp.bfloat16)
    w3_row = jnp.reshape(w3, (1, H)).astype(jnp.float32)
    b1_f = jnp.reshape(b1, (1, H)).astype(jnp.float32)
    b2_f = jnp.reshape(b2, (1, H)).astype(jnp.float32)
    b3_f = jnp.reshape(b3, (1, 1)).astype(jnp.float32)

    flops = int(2 * b_pad * (d_pad * H + H * H + H))
    bytes_accessed = int(
        b_pad * (d_pad * 2 + H * 2 + 4)          # bf16 x_num + bf16 emb_h1 + f32 out
        + (d_pad * H + H * H) * 2                # bf16 weights
        + (H + H + H + 1) * 4                    # f32 b1, b2, w3_row, b3
    )

    out = pl.pallas_call(
        _mlp_kernel,
        out_shape=jax.ShapeDtypeStruct((num_tiles, 1, tb), jnp.float32),
        grid=(num_tiles,),
        in_specs=[
            pl.BlockSpec((tb, d_pad), lambda i: (i, 0)),   # x_num tile (streamed)
            pl.BlockSpec((tb, H), lambda i: (i, 0)),       # folded emb tile (streamed)
            pl.BlockSpec((d_pad, H), lambda i: (0, 0)),    # w1 (resident)
            pl.BlockSpec((1, H), lambda i: (0, 0)),        # b1 (resident)
            pl.BlockSpec((H, H), lambda i: (0, 0)),        # w2 (resident)
            pl.BlockSpec((1, H), lambda i: (0, 0)),        # b2 (resident)
            pl.BlockSpec((1, H), lambda i: (0, 0)),        # w3 row (resident)
            pl.BlockSpec(memory_space=pltpu.SMEM),         # b3 scalar
        ],
        out_specs=pl.BlockSpec((1, 1, tb), lambda i: (i, 0, 0)),
        compiler_params=pltpu.CompilerParams(
            dimension_semantics=("parallel",)),
        cost_estimate=pl.CostEstimate(
            flops=flops, transcendentals=0, bytes_accessed=bytes_accessed),
    )(x_bf, eh_bf, w1_bf, b1_f, w2_bf, b2_f, w3_row, b3_f)

    # torch.squeeze(x): (B, 1) -> (B,). Drop padded rows.
    return out.reshape(-1)[:B]


def init_params(key, src_num_dim, n_categories, hidden=32, emb_dim=10):
    keys = jax.random.split(key, 8 + len(n_categories))
    embs = [
        jax.random.normal(keys[i], (n, emb_dim), dtype=jnp.float32) * 0.1
        for i, n in enumerate(n_categories)
    ]
    k = len(n_categories)
    d_in = src_num_dim + emb_dim * len(n_categories)
    w1 = jax.random.normal(keys[k + 0], (d_in, hidden), dtype=jnp.float32) * 0.1
    b1 = jax.random.normal(keys[k + 1], (1, hidden), dtype=jnp.float32) * 0.01
    w2 = jax.random.normal(keys[k + 2], (hidden, hidden), dtype=jnp.float32) * 0.1
    b2 = jax.random.normal(keys[k + 3], (1, hidden), dtype=jnp.float32) * 0.01
    w3 = jax.random.normal(keys[k + 4], (hidden, 1), dtype=jnp.float32) * 0.1
    b3 = jax.random.normal(keys[k + 5], (1, 1), dtype=jnp.float32) * 0.01
    return {"embs": embs, "w1": w1, "b1": b1, "w2": w2, "b2": b2, "w3": w3, "b3": b3}


def _reference(x_num, x_cat, params):
    emb_outs = [params["embs"][i][x_cat[:, i]] for i in range(x_cat.shape[1])]
    x_all = jnp.concatenate([x_num] + emb_outs, axis=1)
    h1 = jnp.maximum(x_all @ params["w1"] + params["b1"], 0.0)
    h2 = jnp.maximum(h1 @ params["w2"] + params["b2"], 0.0)
    return jnp.squeeze(h2 @ params["w3"] + params["b3"], axis=-1)


if __name__ == "__main__":
    key = jax.random.PRNGKey(0)
    k_param, k_num, k_cat, k_num2, k_cat2 = jax.random.split(key, 5)

    src_num_dim = 12
    n_categories = [5, 7, 3]
    emb_dim = 10
    hidden = 32

    params = init_params(k_param, src_num_dim, n_categories,
                         hidden=hidden, emb_dim=emb_dim)

    # --- small deterministic case (single tile) ---
    batch = 8
    x_num = jax.random.normal(k_num, (batch, src_num_dim), dtype=jnp.float32)
    x_cat = jnp.stack(
        [jax.random.randint(jax.random.fold_in(k_cat, i), (batch,), 0, n,
                            dtype=jnp.int32)
         for i, n in enumerate(n_categories)],
        axis=1,
    )
    out = mlp_forward(x_num, x_cat, params)
    jax.block_until_ready(out)
    ref = _reference(x_num, x_cat, params)
    assert out.shape == (batch,)
    # bf16-streamed kernel vs f32 reference -> relaxed tolerance.
    assert jnp.allclose(out, ref, atol=2e-2, rtol=2e-2)

    # --- multi-tile case (exercises grid + padding of the last tile) ---
    batch2 = 600
    x_num2 = jax.random.normal(k_num2, (batch2, src_num_dim), dtype=jnp.float32)
    x_cat2 = jnp.stack(
        [jax.random.randint(jax.random.fold_in(k_cat2, i), (batch2,), 0, n,
                            dtype=jnp.int32)
         for i, n in enumerate(n_categories)],
        axis=1,
    )
    out2 = mlp_forward(x_num2, x_cat2, params, tb=256)   # 3 grid steps, padded tail
    jax.block_until_ready(out2)
    ref2 = _reference(x_num2, x_cat2, params)
    assert out2.shape == (batch2,)
    assert jnp.allclose(out2, ref2, atol=2e-2, rtol=2e-2)

    print("KERNEL_OK")
</pallas_src>

<mosaic_0001>
module attributes {stable_mosaic.version = 11 : i64} {
  func.func @_mlp_kernel(%arg0: i32, %arg1: memref<256x16xbf16, #tpu.memory_space<vmem>>, %arg2: memref<256x32xbf16, #tpu.memory_space<vmem>>, %arg3: memref<16x32xbf16, #tpu.memory_space<vmem>>, %arg4: memref<1x32xf32, #tpu.memory_space<vmem>>, %arg5: memref<32x32xbf16, #tpu.memory_space<vmem>>, %arg6: memref<1x32xf32, #tpu.memory_space<vmem>>, %arg7: memref<1x32xf32, #tpu.memory_space<vmem>>, %arg8: memref<1x1xf32, #tpu.memory_space<smem>>, %arg9: memref<1x1x256xf32, #tpu.memory_space<vmem>>) attributes {dimension_semantics = [#tpu.dimension_semantics<parallel>], iteration_bounds = array<i64: 1>, scalar_prefetch = 0 : i64, scratch_operands = 0 : i64, tpu.core_type = #tpu.core_type<tc>, window_params = [{transform_indices = @transform_0, window_bounds = array<i64: 256, 16>}, {transform_indices = @transform_1, window_bounds = array<i64: 256, 32>}, {pipeline_mode = #tpu.pipeline_mode<synchronous>, transform_indices = @transform_2, window_bounds = array<i64: 16, 32>}, {pipeline_mode = #tpu.pipeline_mode<synchronous>, transform_indices = @transform_3, window_bounds = array<i64: 1, 32>}, {pipeline_mode = #tpu.pipeline_mode<synchronous>, transform_indices = @transform_4, window_bounds = array<i64: 32, 32>}, {pipeline_mode = #tpu.pipeline_mode<synchronous>, transform_indices = @transform_5, window_bounds = array<i64: 1, 32>}, {pipeline_mode = #tpu.pipeline_mode<synchronous>, transform_indices = @transform_6, window_bounds = array<i64: 1, 32>}, {transform_indices = @transform_7, window_bounds = array<i64: 1, 1>}, {transform_indices = @transform_8, window_bounds = array<i64: 1, 1, 256>}]} {
    %c0 = arith.constant 0 : index
    %c0_0 = arith.constant 0 : index
    %0 = vector.load %arg1[%c0, %c0_0] : memref<256x16xbf16, #tpu.memory_space<vmem>>, vector<256x16xbf16>
    %c0_1 = arith.constant 0 : index
    %c0_2 = arith.constant 0 : index
    %1 = vector.load %arg3[%c0_1, %c0_2] : memref<16x32xbf16, #tpu.memory_space<vmem>>, vector<16x32xbf16>
    %cst = arith.constant dense<0.000000e+00> : vector<256x32xf32>
    %2 = tpu.matmul %0, %1, %cst {dimension_numbers = #tpu.dot_dimension_numbers<[1], [0], [0], [1], [0, 0, 1, 1], [], []>} : vector<256x16xbf16>, vector<16x32xbf16>, vector<256x32xf32> -> vector<256x32xf32>
    %c0_3 = arith.constant 0 : index
    %c0_4 = arith.constant 0 : index
    %3 = vector.load %arg2[%c0_3, %c0_4] : memref<256x32xbf16, #tpu.memory_space<vmem>>, vector<256x32xbf16>
    %4 = arith.extf %3 : vector<256x32xbf16> to vector<256x32xf32>
    %5 = arith.addf %2, %4 : vector<256x32xf32>
    %c0_5 = arith.constant 0 : index
    %c0_6 = arith.constant 0 : index
    %6 = vector.load %arg4[%c0_5, %c0_6] : memref<1x32xf32, #tpu.memory_space<vmem>>, vector<1x32xf32>
    %7 = vector.broadcast %6 : vector<1x32xf32> to vector<256x32xf32>
    %8 = arith.addf %5, %7 : vector<256x32xf32>
    %cst_7 = arith.constant 0.000000e+00 : f32
    %9 = vector.broadcast %cst_7 : f32 to vector<256x32xf32>
    %10 = arith.maximumf %8, %9 : vector<256x32xf32>
    %c0_8 = arith.constant 0 : index
    %c0_9 = arith.constant 0 : index
    %11 = vector.load %arg5[%c0_8, %c0_9] : memref<32x32xbf16, #tpu.memory_space<vmem>>, vector<32x32xbf16>
    %12 = arith.extf %11 : vector<32x32xbf16> to vector<32x32xf32>
    %cst_10 = arith.constant dense<0.000000e+00> : vector<256x32xf32>
    %13 = tpu.matmul %10, %12, %cst_10 {dimension_numbers = #tpu.dot_dimension_numbers<[1], [0], [0], [1], [0, 0, 1, 1], [], []>} : vector<256x32xf32>, vector<32x32xf32>, vector<256x32xf32> -> vector<256x32xf32>
    %c0_11 = arith.constant 0 : index
    %c0_12 = arith.constant 0 : index
    %14 = vector.load %arg6[%c0_11, %c0_12] : memref<1x32xf32, #tpu.memory_space<vmem>>, vector<1x32xf32>
    %15 = vector.broadcast %14 : vector<1x32xf32> to vector<256x32xf32>
    %16 = arith.addf %13, %15 : vector<256x32xf32>
    %cst_13 = arith.constant 0.000000e+00 : f32
    %17 = vector.broadcast %cst_13 : f32 to vector<256x32xf32>
    %18 = arith.maximumf %16, %17 : vector<256x32xf32>
    %c0_14 = arith.constant 0 : index
    %c0_15 = arith.constant 0 : index
    %19 = vector.load %arg7[%c0_14, %c0_15] : memref<1x32xf32, #tpu.memory_space<vmem>>, vector<1x32xf32>
    %cst_16 = arith.constant dense<0.000000e+00> : vector<1x256xf32>
    %20 = tpu.matmul %19, %18, %cst_16 {dimension_numbers = #tpu.dot_dimension_numbers<[1], [1], [0], [0], [0, 0, 1, 0], [], []>} : vector<1x32xf32>, vector<256x32xf32>, vector<1x256xf32> -> vector<1x256xf32>
    %c0_17 = arith.constant 0 : index
    %c0_18 = arith.constant 0 : index
    %21 = memref.load %arg8[%c0_17, %c0_18] : memref<1x1xf32, #tpu.memory_space<smem>>
    %22 = vector.broadcast %21 : f32 to vector<1x256xf32>
    %23 = arith.addf %20, %22 : vector<1x256xf32>
    %c0_19 = arith.constant 0 : index
    %c0_20 = arith.constant 0 : index
    %c0_21 = arith.constant 0 : index
    %24 = vector.load %arg9[%c0_19, %c0_20, %c0_21] : memref<1x1x256xf32, #tpu.memory_space<vmem>>, vector<1x1x256xf32>
    %25 = vector.shape_cast %24 : vector<1x1x256xf32> to vector<1x256xf32>
    %26 = vector.shape_cast %23 : vector<1x256xf32> to vector<1x1x256xf32>
    tpu.vector_store %arg9[%c0_19, %c0_20, %c0_21], %26 {strides = array<i32>} : memref<1x1x256xf32, #tpu.memory_space<vmem>>, vector<1x1x256xf32>,
    return
  }
  func.func @transform_0(%arg0: i32) -> (i32, i32) {
    %c0_i32 = arith.constant 0 : i32
    %c0_i32_0 = arith.constant 0 : i32
    return %arg0, %c0_i32 : i32, i32
  }
  func.func @transform_1(%arg0: i32) -> (i32, i32) {
    %c0_i32 = arith.constant 0 : i32
    %c0_i32_0 = arith.constant 0 : i32
    return %arg0, %c0_i32 : i32, i32
  }
  func.func @transform_2(%arg0: i32) -> (i32, i32) {
    %c0_i32 = arith.constant 0 : i32
    %c0_i32_0 = arith.constant 0 : i32
    %c0_i32_1 = arith.constant 0 : i32
    return %c0_i32, %c0_i32_0 : i32, i32
  }
  func.func @transform_3(%arg0: i32) -> (i32, i32) {
    %c0_i32 = arith.constant 0 : i32
    %c0_i32_0 = arith.constant 0 : i32
    %c0_i32_1 = arith.constant 0 : i32
    return %c0_i32, %c0_i32_0 : i32, i32
  }
  func.func @transform_4(%arg0: i32) -> (i32, i32) {
    %c0_i32 = arith.constant 0 : i32
    %c0_i32_0 = arith.constant 0 : i32
    %c0_i32_1 = arith.constant 0 : i32
    return %c0_i32, %c0_i32_0 : i32, i32
  }
  func.func @transform_5(%arg0: i32) -> (i32, i32) {
    %c0_i32 = arith.constant 0 : i32
    %c0_i32_0 = arith.constant 0 : i32
    %c0_i32_1 = arith.constant 0 : i32
    return %c0_i32, %c0_i32_0 : i32, i32
  }
  func.func @transform_6(%arg0: i32) -> (i32, i32) {
    %c0_i32 = arith.constant 0 : i32
    %c0_i32_0 = arith.constant 0 : i32
    %c0_i32_1 = arith.constant 0 : i32
    return %c0_i32, %c0_i32_0 : i32, i32
  }
  func.func @transform_7(%arg0: i32) -> (i32, i32) {
    %c0_i32 = arith.constant 0 : i32
    %c0_i32_0 = arith.constant 0 : i32
    %c0_i32_1 = arith.constant 0 : i32
    return %c0_i32, %c0_i32_0 : i32, i32
  }
  func.func @transform_8(%arg0: i32) -> (i32, i32, i32) {
    %c0_i32 = arith.constant 0 : i32
    %c0_i32_0 = arith.constant 0 : i32
    %c0_i32_1 = arith.constant 0 : i32
    return %arg0, %c0_i32, %c0_i32_0 : i32, i32, i32
  }
}

</mosaic_0001>

<llo_original>
// kernel: tpu_custom_call.1
$region0: #{tpu_custom_call.1}
  #allocation0 [shape = 'u32[]', space=smem, size = 0x4, offset = 0x4, fixed_abs, tag = 'smem constant byte address 0x4 - core index']
  #allocation1 [shape = 'u32[144,128]{1,0:T(1,128)}', space=vmem, size = 0x12000, scoped, tag = 'internal scratch']
  #allocation2 [shape = 'f32[1,1]{1,0:T(1,128)S(6)}', space=smem, size = 0x200, scoped, tag = 'scoped memory for tpu_custom_call.1']
  %s0 = inlined_call_operand.vmem [shape: bf16[256,16], index: 0, kind: input, shape index: {}]
  %s1 = inlined_call_operand.vmem [shape: bf16[256,32], index: 1, kind: input, shape index: {}]
  %s2 = inlined_call_operand.vmem [shape: bf16[16,32], index: 2, kind: input, shape index: {}]
  %s3 = inlined_call_operand.vmem [shape: f32[1,32], index: 3, kind: input, shape index: {}]
  %s4 = inlined_call_operand.vmem [shape: bf16[32,32], index: 4, kind: input, shape index: {}]
  %s5 = inlined_call_operand.vmem [shape: f32[1,32], index: 5, kind: input, shape index: {}]
  %s6 = inlined_call_operand.vmem [shape: f32[1,32], index: 6, kind: input, shape index: {}]
  %s7 = inlined_call_operand.<no memory space> [shape: f32[1,1], index: 7, kind: input, shape index: {}]
  %s8 = inlined_call_operand.hbm [shape: f32[1,1,256], index: 8, kind: output, shape index: {}]
  %s9 = sld [smem:[#allocation0]]
  $region42: #{tpu_custom_call.1} parent=0
    _
  %s11 = ssub.s32 1, %s9
  %s12 = scalar_select 0, %s11, %s9
  %13 = sst [smem:[#allocation2]] %s7
  $region1: #{tpu_custom_call.1} parent=0
    #allocation3 [shape = 'u8[1024]{0}', space=vmem, size = 0x400, scoped, tag = 'output window, operand 0, single buffered']
    #allocation4 [shape = 's32[1]{0}', space=sflag, size = 0x4, scoped, tag = 'scoped memory for tpu_custom_call.1']
    %14 = vsyncpa [#allocation4], 0
    // Predicated region
    $region2: #{tpu_custom_call.1} parent=1 // pred_check
      _
    $region3: #{tpu_custom_call.1} parent=1 // pred_check_branch
      %16 = sbr.rel (0) target = $region5
    $region4: #{tpu_custom_call.1} parent=1 // pred_region
      _
    $region5: #{tpu_custom_call.1} parent=1 // pred_fallthru
      _
    // Predicated region
    $region6: #{tpu_custom_call.1} parent=1 // pred_check
      _
    $region7: #{tpu_custom_call.1} parent=1 // pred_check_branch
      %18 = sbr.rel (0) target = $region9
    $region8: #{tpu_custom_call.1} parent=1 // pred_region
      _
    $region9: #{tpu_custom_call.1} parent=1 // pred_fallthru
      _
    // Predicated region
    $region10: #{tpu_custom_call.1} parent=1 // pred_check
      _
    $region11: #{tpu_custom_call.1} parent=1 // pred_check_branch
      %20 = sbr.rel (0) target = $region13
    $region12: #{tpu_custom_call.1} parent=1 // pred_region
      _
    $region13: #{tpu_custom_call.1} parent=1 // pred_fallthru
      _
    // Predicated region
    $region14: #{tpu_custom_call.1} parent=1 // pred_check
      _
    $region15: #{tpu_custom_call.1} parent=1 // pred_check_branch
      %22 = sbr.rel (0) target = $region17
    $region16: #{tpu_custom_call.1} parent=1 // pred_region
      _
    $region17: #{tpu_custom_call.1} parent=1 // pred_fallthru
      _
    // Predicated region
    $region18: #{tpu_custom_call.1} parent=1 // pred_check
      _
    $region19: #{tpu_custom_call.1} parent=1 // pred_check_branch
      %24 = sbr.rel (0) target = $region21
    $region20: #{tpu_custom_call.1} parent=1 // pred_region
      _
    $region21: #{tpu_custom_call.1} parent=1 // pred_fallthru
      _
    // Predicated region
    $region22: #{tpu_custom_call.1} parent=1 // pred_check
      _
    $region23: #{tpu_custom_call.1} parent=1 // pred_check_branch
      %26 = sbr.rel (0) target = $region25
    $region24: #{tpu_custom_call.1} parent=1 // pred_region
      _
    $region25: #{tpu_custom_call.1} parent=1 // pred_fallthru
      _
    // Predicated region
    $region26: #{tpu_custom_call.1} parent=1 // pred_check
      _
    $region27: #{tpu_custom_call.1} parent=1 // pred_check_branch
      %28 = sbr.rel (0) target = $region29
    $region28: #{tpu_custom_call.1} parent=1 // pred_region
      _
    $region29: #{tpu_custom_call.1} parent=1 // pred_fallthru
      _
    // Predicated region
    $region30: #{tpu_custom_call.1} parent=1 // pred_check
      _
    $region31: #{tpu_custom_call.1} parent=1 // pred_check_branch
      %30 = sbr.rel (0) target = $region33
    $region32: #{tpu_custom_call.1} parent=1 // pred_region
      _
    $region33: #{tpu_custom_call.1} parent=1 // pred_fallthru
      _
    %v32 = vld [vmem:[%s0] sm:$0xf]
    %v33 = vld [vmem:[%s0 + $0x4] sm:$0xf]
    %v34 = vld [vmem:[%s0 + $0x8] sm:$0xf]
    %v35 = vld [vmem:[%s0 + $0xc] sm:$0xf]
    %v36 = vld [vmem:[%s0 + $0x10] sm:$0xf]
    %v37 = vld [vmem:[%s0 + $0x14] sm:$0xf]
    %v38 = vld [vmem:[%s0 + $0x18] sm:$0xf]
    %v39 = vld [vmem:[%s0 + $0x1c] sm:$0xf]
    %v40 = vld [vmem:[%s0 + $0x20] sm:$0xf]
    %v41 = vld [vmem:[%s0 + $0x24] sm:$0xf]
    %v42 = vld [vmem:[%s0 + $0x28] sm:$0xf]
    %v43 = vld [vmem:[%s0 + $0x2c] sm:$0xf]
    %v44 = vld [vmem:[%s0 + $0x30] sm:$0xf]
    %v45 = vld [vmem:[%s0 + $0x34] sm:$0xf]
    %v46 = vld [vmem:[%s0 + $0x38] sm:$0xf]
    %v47 = vld [vmem:[%s0 + $0x3c] sm:$0xf]
    %v48 = vld [vmem:[%s0 + $0x40] sm:$0xf]
    %v49 = vld [vmem:[%s0 + $0x44] sm:$0xf]
    %v50 = vld [vmem:[%s0 + $0x48] sm:$0xf]
    %v51 = vld [vmem:[%s0 + $0x4c] sm:$0xf]
    %v52 = vld [vmem:[%s0 + $0x50] sm:$0xf]
    %v53 = vld [vmem:[%s0 + $0x54] sm:$0xf]
    %v54 = vld [vmem:[%s0 + $0x58] sm:$0xf]
    %v55 = vld [vmem:[%s0 + $0x5c] sm:$0xf]
    %v56 = vld [vmem:[%s0 + $0x60] sm:$0xf]
    %v57 = vld [vmem:[%s0 + $0x64] sm:$0xf]
    %v58 = vld [vmem:[%s0 + $0x68] sm:$0xf]
    %v59 = vld [vmem:[%s0 + $0x6c] sm:$0xf]
    %v60 = vld [vmem:[%s0 + $0x70] sm:$0xf]
    %v61 = vld [vmem:[%s0 + $0x74] sm:$0xf]
    %v62 = vld [vmem:[%s0 + $0x78] sm:$0xf]
    %v63 = vld [vmem:[%s0 + $0x7c] sm:$0xf]
    %v64 = vld [vmem:[%s2] sm:$0xf]
    %v65 = vld [vmem:[%s2 + $0x4] sm:$0xf]
    %v66 = vld [vmem:[%s1] sm:$0xf]
    %v67 = vld [vmem:[%s1 + $0x4] sm:$0xf]
    %v68 = vld [vmem:[%s1 + $0x8] sm:$0xf]
    %v69 = vld [vmem:[%s1 + $0xc] sm:$0xf]
    %v70 = vld [vmem:[%s1 + $0x10] sm:$0xf]
    %v71 = vld [vmem:[%s1 + $0x14] sm:$0xf]
    %v72 = vld [vmem:[%s1 + $0x18] sm:$0xf]
    %v73 = vld [vmem:[%s1 + $0x1c] sm:$0xf]
    %v74 = vld [vmem:[%s1 + $0x20] sm:$0xf]
    %v75 = vld [vmem:[%s1 + $0x24] sm:$0xf]
    %v76 = vld [vmem:[%s1 + $0x28] sm:$0xf]
    %v77 = vld [vmem:[%s1 + $0x2c] sm:$0xf]
    %v78 = vld [vmem:[%s1 + $0x30] sm:$0xf]
    %v79 = vld [vmem:[%s1 + $0x34] sm:$0xf]
    %v80 = vld [vmem:[%s1 + $0x38] sm:$0xf]
    %v81 = vld [vmem:[%s1 + $0x3c] sm:$0xf]
    %v82 = vld [vmem:[%s1 + $0x40] sm:$0xf]
    %v83 = vld [vmem:[%s1 + $0x44] sm:$0xf]
    %v84 = vld [vmem:[%s1 + $0x48] sm:$0xf]
    %v85 = vld [vmem:[%s1 + $0x4c] sm:$0xf]
    %v86 = vld [vmem:[%s1 + $0x50] sm:$0xf]
    %v87 = vld [vmem:[%s1 + $0x54] sm:$0xf]
    %v88 = vld [vmem:[%s1 + $0x58] sm:$0xf]
    %v89 = vld [vmem:[%s1 + $0x5c] sm:$0xf]
    %v90 = vld [vmem:[%s1 + $0x60] sm:$0xf]
    %v91 = vld [vmem:[%s1 + $0x64] sm:$0xf]
    %v92 = vld [vmem:[%s1 + $0x68] sm:$0xf]
    %v93 = vld [vmem:[%s1 + $0x6c] sm:$0xf]
    %v94 = vld [vmem:[%s1 + $0x70] sm:$0xf]
    %v95 = vld [vmem:[%s1 + $0x74] sm:$0xf]
    %v96 = vld [vmem:[%s1 + $0x78] sm:$0xf]
    %v97 = vld [vmem:[%s1 + $0x7c] sm:$0xf]
    %v98 = vunpack.c.l.bf16 %v66
    %v99 = vunpack.c.l.bf16 %v67
    %v100 = vunpack.c.l.bf16 %v68
    %v101 = vunpack.c.l.bf16 %v69
    %v102 = vunpack.c.l.bf16 %v70
    %v103 = vunpack.c.l.bf16 %v71
    %v104 = vunpack.c.l.bf16 %v72
    %v105 = vunpack.c.l.bf16 %v73
    %v106 = vunpack.c.l.bf16 %v74
    %v107 = vunpack.c.l.bf16 %v75
    %v108 = vunpack.c.l.bf16 %v76
    %v109 = vunpack.c.l.bf16 %v77
    %v110 = vunpack.c.l.bf16 %v78
    %v111 = vunpack.c.l.bf16 %v79
    %v112 = vunpack.c.l.bf16 %v80
    %v113 = vunpack.c.l.bf16 %v81
    %v114 = vunpack.c.l.bf16 %v82
    %v115 = vunpack.c.l.bf16 %v83
    %v116 = vunpack.c.l.bf16 %v84
    %v117 = vunpack.c.l.bf16 %v85
    %v118 = vunpack.c.l.bf16 %v86
    %v119 = vunpack.c.l.bf16 %v87
    %v120 = vunpack.c.l.bf16 %v88
    %v121 = vunpack.c.l.bf16 %v89
    %v122 = vunpack.c.l.bf16 %v90
    %v123 = vunpack.c.l.bf16 %v91
    %v124 = vunpack.c.l.bf16 %v92
    %v125 = vunpack.c.l.bf16 %v93
    %v126 = vunpack.c.l.bf16 %v94
    %v127 = vunpack.c.l.bf16 %v95
    %v128 = vunpack.c.l.bf16 %v96
    %v129 = vunpack.c.l.bf16 %v97
    %v162 = vunpack.c.l.b16 %v32
    %v163 = vunpack.c.l.b16 %v33
    %v164 = vunpack.c.l.b16 %v34
    %v165 = vunpack.c.l.b16 %v35
    %v166 = vunpack.c.l.b16 %v36
    %v167 = vunpack.c.l.b16 %v37
    %v168 = vunpack.c.l.b16 %v38
    %v169 = vunpack.c.l.b16 %v39
    %v170 = vunpack.c.l.b16 %v40
    %v171 = vunpack.c.l.b16 %v41
    %v172 = vunpack.c.l.b16 %v42
    %v173 = vunpack.c.l.b16 %v43
    %v174 = vunpack.c.l.b16 %v44
    %v175 = vunpack.c.l.b16 %v45
    %v176 = vunpack.c.l.b16 %v46
    %v177 = vunpack.c.l.b16 %v47
    %v178 = vunpack.c.l.b16 %v48
    %v179 = vunpack.c.l.b16 %v49
    %v180 = vunpack.c.l.b16 %v50
    %v181 = vunpack.c.l.b16 %v51
    %v182 = vunpack.c.l.b16 %v52
    %v183 = vunpack.c.l.b16 %v53
    %v184 = vunpack.c.l.b16 %v54
    %v185 = vunpack.c.l.b16 %v55
    %v186 = vunpack.c.l.b16 %v56
    %v187 = vunpack.c.l.b16 %v57
    %v188 = vunpack.c.l.b16 %v58
    %v189 = vunpack.c.l.b16 %v59
    %v190 = vunpack.c.l.b16 %v60
    %v191 = vunpack.c.l.b16 %v61
    %v192 = vunpack.c.l.b16 %v62
    %v193 = vunpack.c.l.b16 %v63
    %v194 = vpack.c.b16 %v163, %v162
    %v195 = vpack.c.b16 %v165, %v164
    %v196 = vpack.c.b16 %v167, %v166
    %v197 = vpack.c.b16 %v169, %v168
    %v198 = vpack.c.b16 %v171, %v170
    %v199 = vpack.c.b16 %v173, %v172
    %v200 = vpack.c.b16 %v175, %v174
    %v201 = vpack.c.b16 %v177, %v176
    %v202 = vpack.c.b16 %v179, %v178
    %v203 = vpack.c.b16 %v181, %v180
    %v204 = vpack.c.b16 %v183, %v182
    %v205 = vpack.c.b16 %v185, %v184
    %v206 = vpack.c.b16 %v187, %v186
    %v207 = vpack.c.b16 %v189, %v188
    %v208 = vpack.c.b16 %v191, %v190
    %v209 = vpack.c.b16 %v193, %v192
    %v212 = vunpack.c.l.b16 %v64
    %v213 = vunpack.c.l.b16 %v65
    %v214 = vpack.c.b16 %v213, %v212
    %vm216 = vcmask 130048
    %v218 = vsel %vm216, %v194, 0
    %v221 = vsel %vm216, %v195, 0
    %v224 = vsel %vm216, %v196, 0
    %v227 = vsel %vm216, %v197, 0
    %v230 = vsel %vm216, %v198, 0
    %v233 = vsel %vm216, %v199, 0
    %v236 = vsel %vm216, %v200, 0
    %v239 = vsel %vm216, %v201, 0
    %v242 = vsel %vm216, %v202, 0
    %v245 = vsel %vm216, %v203, 0
    %v248 = vsel %vm216, %v204, 0
    %v251 = vsel %vm216, %v205, 0
    %v254 = vsel %vm216, %v206, 0
    %v257 = vsel %vm216, %v207, 0
    %v260 = vsel %vm216, %v208, 0
    %v263 = vsel %vm216, %v209, 0
    %265 = vmatprep.subr.bf16.mxu0 0
    %266 = vmatpush1.bf16.msra.mxu0 0
    %267 = vmatprep.subr.bf16.mxu0 0
    %268 = vmatpush1.bf16.msra.mxu0 0
    %269 = vmatprep.subr.bf16.mxu0 0
    %270 = vmatpush1.bf16.msra.mxu0 0
    %271 = vmatprep.subr.bf16.mxu0 0
    %272 = vmatpush1.bf16.msra.mxu0 0
    %273 = vmatprep.subr.bf16.mxu0 0
    %274 = vmatpush1.bf16.msra.mxu0 0
    %275 = vmatprep.subr.bf16.mxu0 0
    %276 = vmatpush1.bf16.msra.mxu0 0
    %277 = vmatprep.subr.bf16.mxu0 0
    %278 = vmatpush1.bf16.msra.mxu0 0
    %279 = vmatprep.subr.bf16.mxu0 0
    %280 = vmatpush1.bf16.msra.mxu0 %v214
    %281 = vmatprep.subr.bf16.mxu0 0
    %282 = vmatpush2.bf16.msra.mxu0 0
    %283 = vmatprep.subr.bf16.mxu0 0
    %284 = vmatpush2.bf16.msra.mxu0 0
    %285 = vmatprep.subr.bf16.mxu0 0
    %286 = vmatpush2.bf16.msra.mxu0 0
    %287 = vmatprep.subr.bf16.mxu0 0
    %288 = vmatpush2.bf16.msra.mxu0 0
    %289 = vmatprep.subr.bf16.mxu0 0
    %290 = vmatpush2.bf16.msra.mxu0 0
    %291 = vmatprep.subr.bf16.mxu0 0
    %292 = vmatpush2.bf16.msra.mxu0 0
    %293 = vmatprep.subr.bf16.mxu0 0
    %294 = vmatpush2.bf16.msra.mxu0 0
    %295 = vmatprep.subr.bf16.mxu0 0
    %296 = vmatpush2.bf16.msra.mxu0 0
    %297 = vmatprep.mubr.bf16.mxu0 0
    %298 = vmatmul.mubr.bf16.gmra.mxu0 %v218
    %v299 = vpop.f32.mrf.mxu0
    %v300 = vadd.f32 %v98, %v299
    %v301 = vpop.f32.mrf.mxu0
    %v302 = vpop.f32.mrf.mxu0
    %v303 = vadd.f32 %v99, %v302
    %v304 = vpop.f32.mrf.mxu0
    %305 = vmatprep.mubr.bf16.mxu0 0
    %306 = vmatmul.mubr.bf16.gmra.mxu0 %v221
    %v307 = vpop.f32.mrf.mxu0
    %v308 = vadd.f32 %v100, %v307
    %v309 = vpop.f32.mrf.mxu0
    %v310 = vpop.f32.mrf.mxu0
    %v311 = vadd.f32 %v101, %v310
    %v312 = vpop.f32.mrf.mxu0
    %313 = vmatprep.mubr.bf16.mxu0 0
    %314 = vmatmul.mubr.bf16.gmra.mxu0 %v224
    %v315 = vpop.f32.mrf.mxu0
    %v316 = vadd.f32 %v102, %v315
    %v317 = vpop.f32.mrf.mxu0
    %v318 = vpop.f32.mrf.mxu0
    %v319 = vadd.f32 %v103, %v318
    %v320 = vpop.f32.mrf.mxu0
    %321 = vmatprep.mubr.bf16.mxu0 0
    %322 = vmatmul.mubr.bf16.gmra.mxu0 %v227
    %v323 = vpop.f32.mrf.mxu0
    %v324 = vadd.f32 %v104, %v323
    %v325 = vpop.f32.mrf.mxu0
    %v326 = vpop.f32.mrf.mxu0
    %v327 = vadd.f32 %v105, %v326
    %v328 = vpop.f32.mrf.mxu0
    %329 = vmatprep.mubr.bf16.mxu0 0
    %330 = vmatmul.mubr.bf16.gmra.mxu0 %v230
    %v331 = vpop.f32.mrf.mxu0
    %v332 = vadd.f32 %v106, %v331
    %v333 = vpop.f32.mrf.mxu0
    %v334 = vpop.f32.mrf.mxu0
    %v335 = vadd.f32 %v107, %v334
    %v336 = vpop.f32.mrf.mxu0
    %337 = vmatprep.mubr.bf16.mxu0 0
    %338 = vmatmul.mubr.bf16.gmra.mxu0 %v233
    %v339 = vpop.f32.mrf.mxu0
    %v340 = vadd.f32 %v108, %v339
    %v341 = vpop.f32.mrf.mxu0
    %v342 = vpop.f32.mrf.mxu0
    %v343 = vadd.f32 %v109, %v342
    %v344 = vpop.f32.mrf.mxu0
    %345 = vmatprep.mubr.bf16.mxu0 0
    %346 = vmatmul.mubr.bf16.gmra.mxu0 %v236
    %v347 = vpop.f32.mrf.mxu0
    %v348 = vadd.f32 %v110, %v347
    %v349 = vpop.f32.mrf.mxu0
    %v350 = vpop.f32.mrf.mxu0
    %v351 = vadd.f32 %v111, %v350
    %v352 = vpop.f32.mrf.mxu0
    %353 = vmatprep.mubr.bf16.mxu0 0
    %354 = vmatmul.mubr.bf16.gmra.mxu0 %v239
    %v355 = vpop.f32.mrf.mxu0
    %v356 = vadd.f32 %v112, %v355
    %v357 = vpop.f32.mrf.mxu0
    %v358 = vpop.f32.mrf.mxu0
    %v359 = vadd.f32 %v113, %v358
    %v360 = vpop.f32.mrf.mxu0
    %361 = vmatprep.mubr.bf16.mxu0 0
    %362 = vmatmul.mubr.bf16.gmra.mxu0 %v242
    %v363 = vpop.f32.mrf.mxu0
    %v364 = vadd.f32 %v114, %v363
    %v365 = vpop.f32.mrf.mxu0
    %v366 = vpop.f32.mrf.mxu0
    %v367 = vadd.f32 %v115, %v366
    %v368 = vpop.f32.mrf.mxu0
    %369 = vmatprep.mubr.bf16.mxu0 0
    %370 = vmatmul.mubr.bf16.gmra.mxu0 %v245
    %v371 = vpop.f32.mrf.mxu0
    %v372 = vadd.f32 %v116, %v371
    %v373 = vpop.f32.mrf.mxu0
    %v374 = vpop.f32.mrf.mxu0
    %v375 = vadd.f32 %v117, %v374
    %v376 = vpop.f32.mrf.mxu0
    %377 = vmatprep.mubr.bf16.mxu0 0
    %378 = vmatmul.mubr.bf16.gmra.mxu0 %v248
    %v379 = vpop.f32.mrf.mxu0
    %v380 = vadd.f32 %v118, %v379
    %v381 = vpop.f32.mrf.mxu0
    %v382 = vpop.f32.mrf.mxu0
    %v383 = vadd.f32 %v119, %v382
    %v384 = vpop.f32.mrf.mxu0
    %385 = vmatprep.mubr.bf16.mxu0 0
    %386 = vmatmul.mubr.bf16.gmra.mxu0 %v251
    %v387 = vpop.f32.mrf.mxu0
    %v388 = vadd.f32 %v120, %v387
    %v389 = vpop.f32.mrf.mxu0
    %v390 = vpop.f32.mrf.mxu0
    %v391 = vadd.f32 %v121, %v390
    %v392 = vpop.f32.mrf.mxu0
    %393 = vmatprep.mubr.bf16.mxu0 0
    %394 = vmatmul.mubr.bf16.gmra.mxu0 %v254
    %v395 = vpop.f32.mrf.mxu0
    %v396 = vadd.f32 %v122, %v395
    %v397 = vpop.f32.mrf.mxu0
    %v398 = vpop.f32.mrf.mxu0
    %v399 = vadd.f32 %v123, %v398
    %v400 = vpop.f32.mrf.mxu0
    %401 = vmatprep.mubr.bf16.mxu0 0
    %402 = vmatmul.mubr.bf16.gmra.mxu0 %v257
    %v403 = vpop.f32.mrf.mxu0
    %v404 = vadd.f32 %v124, %v403
    %v405 = vpop.f32.mrf.mxu0
    %v406 = vpop.f32.mrf.mxu0
    %v407 = vadd.f32 %v125, %v406
    %v408 = vpop.f32.mrf.mxu0
    %409 = vmatprep.mubr.bf16.mxu0 0
    %410 = vmatmul.mubr.bf16.gmra.mxu0 %v260
    %v411 = vpop.f32.mrf.mxu0
    %v412 = vadd.f32 %v126, %v411
    %v413 = vpop.f32.mrf.mxu0
    %v414 = vpop.f32.mrf.mxu0
    %v415 = vadd.f32 %v127, %v414
    %v416 = vpop.f32.mrf.mxu0
    %417 = vmatprep.mubr.bf16.mxu0 0
    %418 = vmatmul.mubr.bf16.gmra.mxu0 %v263
    %v419 = vpop.f32.mrf.mxu0
    %v420 = vadd.f32 %v128, %v419
    %v421 = vpop.f32.mrf.mxu0
    %v422 = vpop.f32.mrf.mxu0
    %v423 = vadd.f32 %v129, %v422
    %v424 = vpop.f32.mrf.mxu0
    %425 = vdwg.mxu0
    %v426 = vld [vmem:[%s3] sm:$0x1]
    %v428 = vlaneseq
    %v429 = vshrl.u32 %v428, 7
    %v430 = vsub.s32 0, %v429
    %v431 = vrot.slane %v426, %v430
    %v433 = vadd.f32 %v300, %v431
    %v434 = vadd.f32 %v303, %v431
    %v435 = vadd.f32 %v308, %v431
    %v436 = vadd.f32 %v311, %v431
    %v437 = vadd.f32 %v316, %v431
    %v438 = vadd.f32 %v319, %v431
    %v439 = vadd.f32 %v324, %v431
    %v440 = vadd.f32 %v327, %v431
    %v441 = vadd.f32 %v332, %v431
    %v442 = vadd.f32 %v335, %v431
    %v443 = vadd.f32 %v340, %v431
    %v444 = vadd.f32 %v343, %v431
    %v445 = vadd.f32 %v348, %v431
    %v446 = vadd.f32 %v351, %v431
    %v447 = vadd.f32 %v356, %v431
    %v448 = vadd.f32 %v359, %v431
    %v449 = vadd.f32 %v364, %v431
    %v450 = vadd.f32 %v367, %v431
    %v451 = vadd.f32 %v372, %v431
    %v452 = vadd.f32 %v375, %v431
    %v453 = vadd.f32 %v380, %v431
    %v454 = vadd.f32 %v383, %v431
    %v455 = vadd.f32 %v388, %v431
    %v456 = vadd.f32 %v391, %v431
    %v457 = vadd.f32 %v396, %v431
    %v458 = vadd.f32 %v399, %v431
    %v459 = vadd.f32 %v404, %v431
    %v460 = vadd.f32 %v407, %v431
    %v461 = vadd.f32 %v412, %v431
    %v462 = vadd.f32 %v415, %v431
    %v463 = vadd.f32 %v420, %v431
    %v464 = vadd.f32 %v423, %v431
    %v465 = vmax.f32 %v433, 0.0
    %v466 = vmax.f32 %v434, 0.0
    %v467 = vmax.f32 %v435, 0.0
    %v468 = vmax.f32 %v436, 0.0
    %v469 = vmax.f32 %v437, 0.0
    %v470 = vmax.f32 %v438, 0.0
    %v471 = vmax.f32 %v439, 0.0
    %v472 = vmax.f32 %v440, 0.0
    %v473 = vmax.f32 %v441, 0.0
    %v474 = vmax.f32 %v442, 0.0
    %v475 = vmax.f32 %v443, 0.0
    %v476 = vmax.f32 %v444, 0.0
    %v477 = vmax.f32 %v445, 0.0
    %v478 = vmax.f32 %v446, 0.0
    %v479 = vmax.f32 %v447, 0.0
    %v480 = vmax.f32 %v448, 0.0
    %v481 = vmax.f32 %v449, 0.0
    %v482 = vmax.f32 %v450, 0.0
    %v483 = vmax.f32 %v451, 0.0
    %v484 = vmax.f32 %v452, 0.0
    %v485 = vmax.f32 %v453, 0.0
    %v486 = vmax.f32 %v454, 0.0
    %v487 = vmax.f32 %v455, 0.0
    %v488 = vmax.f32 %v456, 0.0
    %v489 = vmax.f32 %v457, 0.0
    %v490 = vmax.f32 %v458, 0.0
    %v491 = vmax.f32 %v459, 0.0
    %v492 = vmax.f32 %v460, 0.0
    %v493 = vmax.f32 %v461, 0.0
    %v494 = vmax.f32 %v462, 0.0
    %v495 = vmax.f32 %v463, 0.0
    %v496 = vmax.f32 %v464, 0.0
    %v497 = vld [vmem:[%s4] sm:$0xf]
    %v498 = vld [vmem:[%s4 + $0x4] sm:$0xf]
    %v499 = vld [vmem:[%s4 + $0x8] sm:$0xf]
    %v500 = vld [vmem:[%s4 + $0xc] sm:$0xf]
    %v501 = vunpack.c.l.bf16 %v497
    %v502 = vunpack.c.l.bf16 %v498
    %v503 = vunpack.c.l.bf16 %v499
    %v504 = vunpack.c.l.bf16 %v500
    %v505 = vld [vmem:[%s5] sm:$0x1]
    %v507 = vlaneseq
    %v508 = vshrl.u32 %v507, 7
    %v509 = vsub.s32 0, %v508
    %v510 = vrot.slane %v505, %v509
    %vm512 = vcmask 261120
    %v514 = vsel %vm512, %v465, 0
    %v517 = vsel %vm512, %v466, 0
    %v520 = vsel %vm512, %v467, 0
    %v523 = vsel %vm512, %v468, 0
    %v526 = vsel %vm512, %v469, 0
    %v529 = vsel %vm512, %v470, 0
    %v532 = vsel %vm512, %v471, 0
    %v535 = vsel %vm512, %v472, 0
    %v538 = vsel %vm512, %v473, 0
    %v541 = vsel %vm512, %v474, 0
    %v544 = vsel %vm512, %v475, 0
    %v547 = vsel %vm512, %v476, 0
    %v550 = vsel %vm512, %v477, 0
    %v553 = vsel %vm512, %v478, 0
    %v556 = vsel %vm512, %v479, 0
    %v559 = vsel %vm512, %v480, 0
    %v562 = vsel %vm512, %v481, 0
    %v565 = vsel %vm512, %v482, 0
    %v568 = vsel %vm512, %v483, 0
    %v571 = vsel %vm512, %v484, 0
    %v574 = vsel %vm512, %v485, 0
    %v577 = vsel %vm512, %v486, 0
    %v580 = vsel %vm512, %v487, 0
    %v583 = vsel %vm512, %v488, 0
    %v586 = vsel %vm512, %v489, 0
    %v589 = vsel %vm512, %v490, 0
    %v592 = vsel %vm512, %v491, 0
    %v595 = vsel %vm512, %v492, 0
    %v598 = vsel %vm512, %v493, 0
    %v601 = vsel %vm512, %v494, 0
    %v604 = vsel %vm512, %v495, 0
    %v607 = vsel %vm512, %v496, 0
    %609 = vmatprep.subr.mxu0 0.0
    %610 = vmatpush1.msra.mxu0 0.0
    %611 = vmatprep.subr.mxu0 0.0
    %612 = vmatpush1.msra.mxu0 0.0
    %613 = vmatprep.subr.mxu0 0.0
    %614 = vmatpush1.msra.mxu0 0.0
    %615 = vmatprep.subr.mxu0 0.0
    %616 = vmatpush1.msra.mxu0 0.0
    %617 = vmatprep.subr.mxu0 0.0
    %618 = vmatpush1.msra.mxu0 0.0
    %619 = vmatprep.subr.mxu0 0.0
    %620 = vmatpush1.msra.mxu0 0.0
    %621 = vmatprep.subr.mxu0 0.0
    %622 = vmatpush1.msra.mxu0 0.0
    %623 = vmatprep.subr.mxu0 0.0
    %624 = vmatpush1.msra.mxu0 0.0
    %625 = vmatprep.subr.mxu0 0.0
    %626 = vmatpush1.msra.mxu0 0.0
    %627 = vmatprep.subr.mxu0 0.0
    %628 = vmatpush1.msra.mxu0 0.0
    %629 = vmatprep.subr.mxu0 0.0
    %630 = vmatpush1.msra.mxu0 0.0
    %631 = vmatprep.subr.mxu0 0.0
    %632 = vmatpush1.msra.mxu0 0.0
    %633 = vmatprep.subr.mxu0 0.0
    %634 = vmatpush1.msra.mxu0 %v504
    %635 = vmatprep.subr.mxu0 0.0
    %636 = vmatpush1.msra.mxu0 %v503
    %637 = vmatprep.subr.mxu0 0.0
    %638 = vmatpush1.msra.mxu0 %v502
    %639 = vmatprep.subr.mxu0 0.0
    %640 = vmatpush1.msra.mxu0 %v501
    %641 = vmatprep.subr.mxu0 0.0
    %642 = vmatpush2.msra.mxu0 0.0
    %643 = vmatprep.subr.mxu0 0.0
    %644 = vmatpush2.msra.mxu0 0.0
    %645 = vmatprep.subr.mxu0 0.0
    %646 = vmatpush2.msra.mxu0 0.0
    %647 = vmatprep.subr.mxu0 0.0
    %648 = vmatpush2.msra.mxu0 0.0
    %649 = vmatprep.subr.mxu0 0.0
    %650 = vmatpush2.msra.mxu0 0.0
    %651 = vmatprep.subr.mxu0 0.0
    %652 = vmatpush2.msra.mxu0 0.0
    %653 = vmatprep.subr.mxu0 0.0
    %654 = vmatpush2.msra.mxu0 0.0
    %655 = vmatprep.subr.mxu0 0.0
    %656 = vmatpush2.msra.mxu0 0.0
    %657 = vmatprep.subr.mxu0 0.0
    %658 = vmatpush2.msra.mxu0 0.0
    %659 = vmatprep.subr.mxu0 0.0
    %660 = vmatpush2.msra.mxu0 0.0
    %661 = vmatprep.subr.mxu0 0.0
    %662 = vmatpush2.msra.mxu0 0.0
    %663 = vmatprep.subr.mxu0 0.0
    %664 = vmatpush2.msra.mxu0 0.0
    %665 = vmatprep.subr.mxu0 0.0
    %666 = vmatpush2.msra.mxu0 0.0
    %667 = vmatprep.subr.mxu0 0.0
    %668 = vmatpush2.msra.mxu0 0.0
    %669 = vmatprep.subr.mxu0 0.0
    %670 = vmatpush2.msra.mxu0 0.0
    %671 = vmatprep.subr.mxu0 0.0
    %672 = vmatpush2.msra.mxu0 0.0
    %673 = vmatprep.mubr.f32.mxu0 0.0
    %674 = vmatmul.mubr.f32.gmra.mxu0 %v514
    %v675 = vpop.f32.mrf.mxu0
    %v676 = vadd.f32 %v510, %v675
    %v677 = vpop.f32.mrf.mxu0
    %678 = vmatprep.mubr.f32.mxu0 0.0
    %679 = vmatmul.mubr.f32.gmra.mxu0 %v517
    %v680 = vpop.f32.mrf.mxu0
    %v681 = vadd.f32 %v510, %v680
    %v682 = vpop.f32.mrf.mxu0
    %683 = vmatprep.mubr.f32.mxu0 0.0
    %684 = vmatmul.mubr.f32.gmra.mxu0 %v520
    %v685 = vpop.f32.mrf.mxu0
    %v686 = vadd.f32 %v510, %v685
    %v687 = vpop.f32.mrf.mxu0
    %688 = vmatprep.mubr.f32.mxu0 0.0
    %689 = vmatmul.mubr.f32.gmra.mxu0 %v523
    %v690 = vpop.f32.mrf.mxu0
    %v691 = vadd.f32 %v510, %v690
    %v692 = vpop.f32.mrf.mxu0
    %693 = vmatprep.mubr.f32.mxu0 0.0
    %694 = vmatmul.mubr.f32.gmra.mxu0 %v526
    %v695 = vpop.f32.mrf.mxu0
    %v696 = vadd.f32 %v510, %v695
    %v697 = vpop.f32.mrf.mxu0
    %698 = vmatprep.mubr.f32.mxu0 0.0
    %699 = vmatmul.mubr.f32.gmra.mxu0 %v529
    %v700 = vpop.f32.mrf.mxu0
    %v701 = vadd.f32 %v510, %v700
    %v702 = vpop.f32.mrf.mxu0
    %703 = vmatprep.mubr.f32.mxu0 0.0
    %704 = vmatmul.mubr.f32.gmra.mxu0 %v532
    %v705 = vpop.f32.mrf.mxu0
    %v706 = vadd.f32 %v510, %v705
    %v707 = vpop.f32.mrf.mxu0
    %708 = vmatprep.mubr.f32.mxu0 0.0
    %709 = vmatmul.mubr.f32.gmra.mxu0 %v535
    %v710 = vpop.f32.mrf.mxu0
    %v711 = vadd.f32 %v510, %v710
    %v712 = vpop.f32.mrf.mxu0
    %713 = vmatprep.mubr.f32.mxu0 0.0
    %714 = vmatmul.mubr.f32.gmra.mxu0 %v538
    %v715 = vpop.f32.mrf.mxu0
    %v716 = vadd.f32 %v510, %v715
    %v717 = vpop.f32.mrf.mxu0
    %718 = vmatprep.mubr.f32.mxu0 0.0
    %719 = vmatmul.mubr.f32.gmra.mxu0 %v541
    %v720 = vpop.f32.mrf.mxu0
    %v721 = vadd.f32 %v510, %v720
    %v722 = vpop.f32.mrf.mxu0
    %723 = vmatprep.mubr.f32.mxu0 0.0
    %724 = vmatmul.mubr.f32.gmra.mxu0 %v544
    %v725 = vpop.f32.mrf.mxu0
    %v726 = vadd.f32 %v510, %v725
    %v727 = vpop.f32.mrf.mxu0
    %728 = vmatprep.mubr.f32.mxu0 0.0
    %729 = vmatmul.mubr.f32.gmra.mxu0 %v547
    %v730 = vpop.f32.mrf.mxu0
    %v731 = vadd.f32 %v510, %v730
    %v732 = vpop.f32.mrf.mxu0
    %733 = vmatprep.mubr.f32.mxu0 0.0
    %734 = vmatmul.mubr.f32.gmra.mxu0 %v550
    %v735 = vpop.f32.mrf.mxu0
    %v736 = vadd.f32 %v510, %v735
    %v737 = vpop.f32.mrf.mxu0
    %738 = vmatprep.mubr.f32.mxu0 0.0
    %739 = vmatmul.mubr.f32.gmra.mxu0 %v553
    %v740 = vpop.f32.mrf.mxu0
    %v741 = vadd.f32 %v510, %v740
    %v742 = vpop.f32.mrf.mxu0
    %743 = vmatprep.mubr.f32.mxu0 0.0
    %744 = vmatmul.mubr.f32.gmra.mxu0 %v556
    %v745 = vpop.f32.mrf.mxu0
    %v746 = vadd.f32 %v510, %v745
    %v747 = vpop.f32.mrf.mxu0
    %748 = vmatprep.mubr.f32.mxu0 0.0
    %749 = vmatmul.mubr.f32.gmra.mxu0 %v559
    %v750 = vpop.f32.mrf.mxu0
    %v751 = vadd.f32 %v510, %v750
    %v752 = vpop.f32.mrf.mxu0
    %753 = vmatprep.mubr.f32.mxu0 0.0
    %754 = vmatmul.mubr.f32.gmra.mxu0 %v562
    %v755 = vpop.f32.mrf.mxu0
    %v756 = vadd.f32 %v510, %v755
    %v757 = vpop.f32.mrf.mxu0
    %758 = vmatprep.mubr.f32.mxu0 0.0
    %759 = vmatmul.mubr.f32.gmra.mxu0 %v565
    %v760 = vpop.f32.mrf.mxu0
    %v761 = vadd.f32 %v510, %v760
    %v762 = vpop.f32.mrf.mxu0
    %763 = vmatprep.mubr.f32.mxu0 0.0
    %764 = vmatmul.mubr.f32.gmra.mxu0 %v568
    %v765 = vpop.f32.mrf.mxu0
    %v766 = vadd.f32 %v510, %v765
    %v767 = vpop.f32.mrf.mxu0
    %768 = vmatprep.mubr.f32.mxu0 0.0
    %769 = vmatmul.mubr.f32.gmra.mxu0 %v571
    %v770 = vpop.f32.mrf.mxu0
    %v771 = vadd.f32 %v510, %v770
    %v772 = vpop.f32.mrf.mxu0
    %773 = vmatprep.mubr.f32.mxu0 0.0
    %774 = vmatmul.mubr.f32.gmra.mxu0 %v574
    %v775 = vpop.f32.mrf.mxu0
    %v776 = vadd.f32 %v510, %v775
    %v777 = vpop.f32.mrf.mxu0
    %778 = vmatprep.mubr.f32.mxu0 0.0
    %779 = vmatmul.mubr.f32.gmra.mxu0 %v577
    %v780 = vpop.f32.mrf.mxu0
    %v781 = vadd.f32 %v510, %v780
    %v782 = vpop.f32.mrf.mxu0
    %783 = vmatprep.mubr.f32.mxu0 0.0
    %784 = vmatmul.mubr.f32.gmra.mxu0 %v580
    %v785 = vpop.f32.mrf.mxu0
    %v786 = vadd.f32 %v510, %v785
    %v787 = vpop.f32.mrf.mxu0
    %788 = vmatprep.mubr.f32.mxu0 0.0
    %789 = vmatmul.mubr.f32.gmra.mxu0 %v583
    %v790 = vpop.f32.mrf.mxu0
    %v791 = vadd.f32 %v510, %v790
    %v792 = vpop.f32.mrf.mxu0
    %793 = vmatprep.mubr.f32.mxu0 0.0
    %794 = vmatmul.mubr.f32.gmra.mxu0 %v586
    %v795 = vpop.f32.mrf.mxu0
    %v796 = vadd.f32 %v510, %v795
    %v797 = vpop.f32.mrf.mxu0
    %798 = vmatprep.mubr.f32.mxu0 0.0
    %799 = vmatmul.mubr.f32.gmra.mxu0 %v589
    %v800 = vpop.f32.mrf.mxu0
    %v801 = vadd.f32 %v510, %v800
    %v802 = vpop.f32.mrf.mxu0
    %803 = vmatprep.mubr.f32.mxu0 0.0
    %804 = vmatmul.mubr.f32.gmra.mxu0 %v592
    %v805 = vpop.f32.mrf.mxu0
    %v806 = vadd.f32 %v510, %v805
    %v807 = vpop.f32.mrf.mxu0
    %808 = vmatprep.mubr.f32.mxu0 0.0
    %809 = vmatmul.mubr.f32.gmra.mxu0 %v595
    %v810 = vpop.f32.mrf.mxu0
    %v811 = vadd.f32 %v510, %v810
    %v812 = vpop.f32.mrf.mxu0
    %813 = vmatprep.mubr.f32.mxu0 0.0
    %814 = vmatmul.mubr.f32.gmra.mxu0 %v598
    %v815 = vpop.f32.mrf.mxu0
    %v816 = vadd.f32 %v510, %v815
    %v817 = vpop.f32.mrf.mxu0
    %818 = vmatprep.mubr.f32.mxu0 0.0
    %819 = vmatmul.mubr.f32.gmra.mxu0 %v601
    %v820 = vpop.f32.mrf.mxu0
    %v821 = vadd.f32 %v510, %v820
    %v822 = vpop.f32.mrf.mxu0
    %823 = vmatprep.mubr.f32.mxu0 0.0
    %824 = vmatmul.mubr.f32.gmra.mxu0 %v604
    %v825 = vpop.f32.mrf.mxu0
    %v826 = vadd.f32 %v510, %v825
    %v827 = vpop.f32.mrf.mxu0
    %828 = vmatprep.mubr.f32.mxu0 0.0
    %829 = vmatmul.mubr.f32.gmra.mxu0 %v607
    %v830 = vpop.f32.mrf.mxu0
    %v831 = vadd.f32 %v510, %v830
    %v832 = vpop.f32.mrf.mxu0
    %833 = vdwg.mxu0
    %v834 = vmax.f32 %v676, 0.0
    %v835 = vmax.f32 %v681, 0.0
    %v836 = vmax.f32 %v686, 0.0
    %v837 = vmax.f32 %v691, 0.0
    %v838 = vmax.f32 %v696, 0.0
    %v839 = vmax.f32 %v701, 0.0
    %v840 = vmax.f32 %v706, 0.0
    %v841 = vmax.f32 %v711, 0.0
    %v842 = vmax.f32 %v716, 0.0
    %v843 = vmax.f32 %v721, 0.0
    %v844 = vmax.f32 %v726, 0.0
    %v845 = vmax.f32 %v731, 0.0
    %v846 = vmax.f32 %v736, 0.0
    %v847 = vmax.f32 %v741, 0.0
    %v848 = vmax.f32 %v746, 0.0
    %v849 = vmax.f32 %v751, 0.0
    %v850 = vmax.f32 %v756, 0.0
    %v851 = vmax.f32 %v761, 0.0
    %v852 = vmax.f32 %v766, 0.0
    %v853 = vmax.f32 %v771, 0.0
    %v854 = vmax.f32 %v776, 0.0
    %v855 = vmax.f32 %v781, 0.0
    %v856 = vmax.f32 %v786, 0.0
    %v857 = vmax.f32 %v791, 0.0
    %v858 = vmax.f32 %v796, 0.0
    %v859 = vmax.f32 %v801, 0.0
    %v860 = vmax.f32 %v806, 0.0
    %v861 = vmax.f32 %v811, 0.0
    %v862 = vmax.f32 %v816, 0.0
    %v863 = vmax.f32 %v821, 0.0
    %v864 = vmax.f32 %v826, 0.0
    %v865 = vmax.f32 %v831, 0.0
    %v866 = vld [vmem:[%s6] sm:$0x1]
    %s867 = sld [smem:[#allocation2]]
    %v868 = vstv %s867
    %v870 = vsel %vm512, %v866, 0
    %v873 = vsel %vm512, %v834, 0
    %v876 = vsel %vm512, %v835, 0
    %v879 = vsel %vm512, %v836, 0
    %v882 = vsel %vm512, %v837, 0
    %v885 = vsel %vm512, %v838, 0
    %v888 = vsel %vm512, %v839, 0
    %v891 = vsel %vm512, %v840, 0
    %v894 = vsel %vm512, %v841, 0
    %v897 = vsel %vm512, %v842, 0
    %v900 = vsel %vm512, %v843, 0
    %v903 = vsel %vm512, %v844, 0
    %v906 = vsel %vm512, %v845, 0
    %v909 = vsel %vm512, %v846, 0
    %v912 = vsel %vm512, %v847, 0
    %v915 = vsel %vm512, %v848, 0
    %v918 = vsel %vm512, %v849, 0
    %v921 = vsel %vm512, %v850, 0
    %v924 = vsel %vm512, %v851, 0
    %v927 = vsel %vm512, %v852, 0
    %v930 = vsel %vm512, %v853, 0
    %v933 = vsel %vm512, %v854, 0
    %v936 = vsel %vm512, %v855, 0
    %v939 = vsel %vm512, %v856, 0
    %v942 = vsel %vm512, %v857, 0
    %v945 = vsel %vm512, %v858, 0
    %v948 = vsel %vm512, %v859, 0
    %v951 = vsel %vm512, %v860, 0
    %v954 = vsel %vm512, %v861, 0
    %v957 = vsel %vm512, %v862, 0
    %v960 = vsel %vm512, %v863, 0
    %v963 = vsel %vm512, %v864, 0
    %v966 = vsel %vm512, %v865, 0
    %968 = vmatprep.subr.mxu0 0.0
    %969 = vmatpush1.xpose.msra.mxu0 %v918
    %970 = vmatprep.subr.mxu0 0.0
    %971 = vmatpush1.xpose.msra.mxu0 %v915
    %972 = vmatprep.subr.mxu0 0.0
    %973 = vmatpush1.xpose.msra.mxu0 %v912
    %974 = vmatprep.subr.mxu0 0.0
    %975 = vmatpush1.xpose.msra.mxu0 %v909
    %976 = vmatprep.subr.mxu0 0.0
    %977 = vmatpush1.xpose.msra.mxu0 %v906
    %978 = vmatprep.subr.mxu0 0.0
    %979 = vmatpush1.xpose.msra.mxu0 %v903
    %980 = vmatprep.subr.mxu0 0.0
    %981 = vmatpush1.xpose.msra.mxu0 %v900
    %982 = vmatprep.subr.mxu0 0.0
    %983 = vmatpush1.xpose.msra.mxu0 %v897
    %984 = vmatprep.subr.mxu0 0.0
    %985 = vmatpush1.xpose.msra.mxu0 %v894
    %986 = vmatprep.subr.mxu0 0.0
    %987 = vmatpush1.xpose.msra.mxu0 %v891
    %988 = vmatprep.subr.mxu0 0.0
    %989 = vmatpush1.xpose.msra.mxu0 %v888
    %990 = vmatprep.subr.mxu0 0.0
    %991 = vmatpush1.xpose.msra.mxu0 %v885
    %992 = vmatprep.subr.mxu0 0.0
    %993 = vmatpush1.xpose.msra.mxu0 %v882
    %994 = vmatprep.subr.mxu0 0.0
    %995 = vmatpush1.xpose.msra.mxu0 %v879
    %996 = vmatprep.subr.mxu0 0.0
    %997 = vmatpush1.xpose.msra.mxu0 %v876
    %998 = vmatprep.subr.mxu0 0.0
    %999 = vmatpush1.xpose.msra.mxu0 %v873
    %1000 = vmatprep.subr.mxu0 0.0
    %1001 = vmatpush2.xpose.msra.mxu0 %v966
    %1002 = vmatprep.subr.mxu0 0.0
    %1003 = vmatpush2.xpose.msra.mxu0 %v963
    %1004 = vmatprep.subr.mxu0 0.0
    %1005 = vmatpush2.xpose.msra.mxu0 %v960
    %1006 = vmatprep.subr.mxu0 0.0
    %1007 = vmatpush2.xpose.msra.mxu0 %v957
    %1008 = vmatprep.subr.mxu0 0.0
    %1009 = vmatpush2.xpose.msra.mxu0 %v954
    %1010 = vmatprep.subr.mxu0 0.0
    %1011 = vmatpush2.xpose.msra.mxu0 %v951
    %1012 = vmatprep.subr.mxu0 0.0
    %1013 = vmatpush2.xpose.msra.mxu0 %v948
    %1014 = vmatprep.subr.mxu0 0.0
    %1015 = vmatpush2.xpose.msra.mxu0 %v945
    %1016 = vmatprep.subr.mxu0 0.0
    %1017 = vmatpush2.xpose.msra.mxu0 %v942
    %1018 = vmatprep.subr.mxu0 0.0
    %1019 = vmatpush2.xpose.msra.mxu0 %v939
    %1020 = vmatprep.subr.mxu0 0.0
    %1021 = vmatpush2.xpose.msra.mxu0 %v936
    %1022 = vmatprep.subr.mxu0 0.0
    %1023 = vmatpush2.xpose.msra.mxu0 %v933
    %1024 = vmatprep.subr.mxu0 0.0
    %1025 = vmatpush2.xpose.msra.mxu0 %v930
    %1026 = vmatprep.subr.mxu0 0.0
    %1027 = vmatpush2.xpose.msra.mxu0 %v927
    %1028 = vmatprep.subr.mxu0 0.0
    %1029 = vmatpush2.xpose.msra.mxu0 %v924
    %1030 = vmatprep.subr.mxu0 0.0
    %1031 = vmatpush2.xpose.msra.mxu0 %v921
    %1032 = vmatprep.mubr.f32.mxu0 0.0
    %1033 = vmatmul.mubr.f32.gmra.mxu0 %v870
    %v1034 = vpop.f32.mrf.mxu0
    %v1035 = vadd.f32 %v868, %v1034
    %v1036 = vpop.f32.mrf.mxu0
    %v1037 = vadd.f32 %v868, %v1036
    %1038 = vdwg.mxu0
    %v1041 = vcombine.low %v1035, %v1037
    %v1043 = vunpack.c.l.s4 1966171168
    %v1044 = vunpack.c.0.s8 %v1043
    %v1045 = vlaneseq
    %v1046 = vshrl.u32 %v1045, 7
    %v1047 = vsub.s32 %v1044, %v1046
    %v1048 = vrot.slane %v1041, %v1047
    %v1050 = vunpack.c.l.s4 1966171168
    %v1051 = vunpack.c.0.s8 %v1050
    %v1052 = vlaneseq
    %v1053 = vshrl.u32 %v1052, 7
    %v1054 = vsub.s32 %v1051, %v1053
    %v1055 = vrot.slane %v1048, %v1054
    %v1057 = vlaneseq
    %vm1058 = vcmp.ge.s32.totalorder %v1057, 0
    %vm1059 = vcmp.lt.s32.totalorder %v1057, 256
    %vm1060 = vmand %vm1058, %vm1059
    %1061 = vst.msk [vmem:[#allocation3] sm:$0x3] %vm1060, %v1055
    // Predicated region
    $region34: #{tpu_custom_call.1} parent=1 // pred_check
      _
    $region35: #{tpu_custom_call.1} parent=1 // pred_check_branch
      %1063 = sbr.rel (0) target = $region37
    $region36: #{tpu_custom_call.1} parent=1 // pred_region
      %s1065 = ssub.s32 32, 32
      %1066 = vsyncadd [#allocation4], %s1065
      %s1068 = sshll.u32 [#allocation3], 4
      %s1069 = int_to_ptr.vmem [resolvable:$true] %s1068
      %1071 = dma.vmem_to_hbm [thread:$0]  %s1069, 32, %s8, [#allocation4]
    $region37: #{tpu_custom_call.1} parent=1 // pred_fallthru
      _
    // Predicated region
    $region38: #{tpu_custom_call.1} parent=1 // pred_check
      _
    $region39: #{tpu_custom_call.1} parent=1 // pred_check_branch
      %1073 = sbr.rel (0) target = $region41
    $region40: #{tpu_custom_call.1} parent=1 // pred_region
      %1074 = dma.done [#allocation4], 32
    $region41: #{tpu_custom_call.1} parent=1 // pred_fallthru
      _
    %1075 = vsyncpa [#allocation4], 1

</llo_original>
